<compile_context>
chip_gen: v6e
topology: v6e:2x2x1
jax: 0.10.0
libtpu: 0.0.40
codegen_flags: <defaults>
</compile_context>

<pallas_src>
import jax
import jax.numpy as jnp
from jax.experimental import pallas as pl
from jax.experimental.pallas import tpu as pltpu

_LANE_CANDIDATES = (2048, 1024, 512, 256, 128)
# n (elements) at or below this and not a multiple of 128 -> single full-array
# (1, n) block (no padding, no (8,128) constraint).  Above it (rare), pad.
_SMALL_FULL_BLOCK_ELEMS = 64 * 1024
_DEFAULT_BLOCK_BYTES = 4 * 1024 * 1024      # ~4 MiB per f32 buffer
_VMEM_LIMIT_BYTES = 32 * 1024 * 1024        # 3 streams x 2 bufs x ~4 MiB < 32 MiB


def _saturating_sigmoid(x):
    # sigmoid(x) == 0.5 * tanh(0.5 * x) + 0.5 : one EUP push per vreg, exact.
    sig = 0.5 * jnp.tanh(0.5 * x) + 0.5
    return jnp.clip(1.2 * sig - 0.1, 0.0, 1.0)


def _semhash_eval_kernel(flag_ref, score_ref, out_ref):
    """Eval mode: x = scores (the gaussian noise is all zeros, so it is omitted)."""

    @pl.when(flag_ref[0] > 0)               # seed > 0.5 -> saturating sigmoid (v1)
    def _v1():
        out_ref[...] = _saturating_sigmoid(score_ref[...]).astype(out_ref.dtype)

    @pl.when(flag_ref[0] <= 0)              # seed <= 0.5 -> hard threshold (v2 value)
    def _v2():
        out_ref[...] = (score_ref[...] > 0.0).astype(out_ref.dtype)


def _semhash_train_kernel(flag_ref, score_ref, noise_ref, out_ref):
    """Training mode: x = scores + gaussian noise (add fused in-kernel)."""
    x = score_ref[...] + noise_ref[...]

    @pl.when(flag_ref[0] > 0)
    def _v1():
        out_ref[...] = _saturating_sigmoid(x).astype(out_ref.dtype)

    @pl.when(flag_ref[0] <= 0)
    def _v2():
        out_ref[...] = (x > 0.0).astype(out_ref.dtype)


def _layout(n, max_block_bytes):
    """Pick a lane-dense (rows, lane) view of n elements plus a row-tile size.

    Returns (rows, lane, tile_rows, pad_elems).  pad_elems == 0 on the common
    paths, so the wrapper reshapes are metadata-only (no extra HBM traffic).
    """
    lane = None
    for cand in _LANE_CANDIDATES:
        if n % cand == 0:
            lane = cand
            break
    pad = 0
    if lane is None:
        if n <= _SMALL_FULL_BLOCK_ELEMS:
            # Single full-array block (1, n): legal for any n, copy-free.
            return 1, n, 1, 0
        # Rare fallback: large n not a multiple of 128 -> pad the flat array.
        lane = 128
        rows = pl.cdiv(n, lane)
        pad = rows * lane - n
    else:
        rows = n // lane

    if max_block_bytes is None:
        max_block_bytes = _DEFAULT_BLOCK_BYTES
    target_rows = max(8, max_block_bytes // (4 * lane))
    # Guarantee >=2 grid steps when there is enough data: keeps DMA/compute
    # double-buffering alive and lets "parallel" shard rows over v7x's 2 TCs.
    min_steps = 2 if rows >= 16 else 1
    steps = max(min_steps, pl.cdiv(rows, target_rows))
    tile_rows = pl.cdiv(rows, steps)
    tile_rows = ((tile_rows + 7) // 8) * 8      # sublane multiple of 8
    if tile_rows >= rows:
        tile_rows = rows                        # full second-to-last dim: always legal
    return rows, lane, tile_rows, pad


def improved_semhash(scores, seed_uniform, noise=None, *,
                     force_pallas=False, min_pallas_elems=4096,
                     max_block_bytes=None):
    """Forward pass of Improved_Semhash.

    scores: (B, clip_num, 1) float32.
    seed_uniform: scalar in [0, 1)  (torch.rand(1) equivalent).
    noise: (B, clip_num, 1) float32 gaussian noise (training) or None (eval).
    """
    B, C, _ = scores.shape
    n = B * C
    select_v1 = seed_uniform > 0.5

    # Tiny-shape fast path: kernel launch + DMA setup dominate; let XLA fuse.
    if n < min_pallas_elems and not force_pallas:
        x = scores if noise is None else scores + noise
        v1 = _saturating_sigmoid(x)
        v2 = (x > 0.0).astype(scores.dtype)
        return jnp.where(select_v1, v1, v2)

    rows, lane, tile_rows, pad = _layout(n, max_block_bytes)

    def _to_slab(a):
        flat = a.reshape(-1)
        if pad:
            flat = jnp.pad(flat, (0, pad))      # rare fallback only
        return flat.reshape(rows, lane)

    flag = jnp.asarray(select_v1, jnp.int32).reshape(1)
    blk = pl.BlockSpec((tile_rows, lane), lambda i, flag: (i, 0))
    grid = (pl.cdiv(rows, tile_rows),)
    score_slab = _to_slab(scores)

    if noise is None:
        kernel = _semhash_eval_kernel
        in_specs = [blk]
        operands = (flag, score_slab)
        n_streams = 2                            # scores + output
    else:
        kernel = _semhash_train_kernel
        in_specs = [blk, blk]
        operands = (flag, score_slab, _to_slab(noise))
        n_streams = 3                            # scores + noise + output

    n_slab = rows * lane
    cost = pl.CostEstimate(
        flops=6 * n_slab,
        transcendentals=n_slab,
        bytes_accessed=4 * n_slab * n_streams,
    )

    out_slab = pl.pallas_call(
        kernel,
        out_shape=jax.ShapeDtypeStruct((rows, lane), scores.dtype),
        grid_spec=pltpu.PrefetchScalarGridSpec(
            num_scalar_prefetch=1,
            grid=grid,
            in_specs=in_specs,
            out_specs=blk,
        ),
        compiler_params=pltpu.CompilerParams(
            dimension_semantics=("parallel",),   # shard rows across v7x's 2 TCs
            vmem_limit_bytes=_VMEM_LIMIT_BYTES,
        ),
        cost_estimate=cost,
    )(*operands)

    out_flat = out_slab.reshape(-1)
    if pad:
        out_flat = out_flat[:n]
    return out_flat.reshape(B, C, 1)


def _reference(scores, noise, seed_uniform):
    """Plain-JAX reference of the torch forward value."""
    x = scores if noise is None else scores + noise
    sig = jax.nn.sigmoid(x)
    v1 = jnp.clip(1.2 * sig - 0.1, 0.0, 1.0)
    v2 = (x > 0.0).astype(x.dtype)               # .detach() terms cancel in value
    return jnp.where(seed_uniform > 0.5, v1, v2)


if __name__ == "__main__":
    key = jax.random.PRNGKey(0)
    k_scores, k_noise, k_seed = jax.random.split(key, 3)

    # --- eval mode at the module's canonical small shape ----------------------
    B, clip_num = 2, 8
    scores = jax.random.normal(k_scores, (B, clip_num, 1), dtype=jnp.float32)
    seed_uniform = jax.random.uniform(k_seed, ())          # torch.rand(1)

    for seed in (jnp.float32(0.9), jnp.float32(0.1), seed_uniform):
        out = improved_semhash(scores, seed, noise=None, force_pallas=True)
        jax.block_until_ready(out)
        assert out.shape == (B, clip_num, 1)
        ref = _reference(scores, None, seed)
        assert jnp.allclose(out, ref, atol=1e-5, rtol=1e-5), "eval-mode mismatch"

    # --- training mode (gaussian noise fused in-kernel) ------------------------
    B2, C2 = 4, 16
    scores2 = jax.random.normal(k_scores, (B2, C2, 1), dtype=jnp.float32)
    noise2 = jax.random.normal(k_noise, (B2, C2, 1), dtype=jnp.float32)
    for seed in (jnp.float32(0.9), jnp.float32(0.1)):
        out = improved_semhash(scores2, seed, noise=noise2, force_pallas=True)
        jax.block_until_ready(out)
        ref = _reference(scores2, noise2, seed)
        assert jnp.allclose(out, ref, atol=1e-5, rtol=1e-5), "train-mode mismatch"

    # --- multi-step grid with a masked tail (lane=128, rows=9, tile=8) --------
    B3, C3 = 3, 384                                         # n = 1152 = 9 * 128
    scores3 = jax.random.normal(k_scores, (B3, C3, 1), dtype=jnp.float32)
    noise3 = jax.random.normal(k_noise, (B3, C3, 1), dtype=jnp.float32)
    for seed in (jnp.float32(0.9), jnp.float32(0.1)):
        out = improved_semhash(scores3, seed, noise=noise3, force_pallas=True,
                               max_block_bytes=4 * 1024)
        jax.block_until_ready(out)
        ref = _reference(scores3, noise3, seed)
        assert jnp.allclose(out, ref, atol=1e-5, rtol=1e-5), "tail-mask mismatch"

    # --- divisor (no-pad) path with >=2 grid steps (n = 65536) ----------------
    B4, C4 = 32, 2048
    scores4 = jax.random.normal(k_scores, (B4, C4, 1), dtype=jnp.float32)
    out = improved_semhash(scores4, jnp.float32(0.9), noise=None, force_pallas=True)
    jax.block_until_ready(out)
    ref = _reference(scores4, None, jnp.float32(0.9))
    assert jnp.allclose(out, ref, atol=1e-5, rtol=1e-5), "large eval mismatch"

    # --- tiny-shape fast path (bypasses Pallas) must agree too ----------------
    out_fast = improved_semhash(scores, jnp.float32(0.9), noise=None)
    jax.block_until_ready(out_fast)
    assert jnp.allclose(out_fast, _reference(scores, None, jnp.float32(0.9)),
                        atol=1e-6), "fast-path mismatch"

    print("KERNEL_OK")
</pallas_src>

<mosaic_0001>
module attributes {stable_mosaic.version = 11 : i64} {
  func.func @_semhash_eval_kernel(%arg0: i32, %arg1: memref<1xi32, #tpu.memory_space<smem>>, %arg2: memref<1x16xf32, #tpu.memory_space<vmem>>, %arg3: memref<1x16xf32, #tpu.memory_space<vmem>>) attributes {dimension_semantics = [#tpu.dimension_semantics<parallel>], iteration_bounds = array<i64: 1>, scalar_prefetch = 1 : i64, scratch_operands = 0 : i64, tpu.core_type = #tpu.core_type<tc>, window_params = [{transform_indices = @transform_0, window_bounds = array<i64: 1, 16>}, {transform_indices = @transform_1, window_bounds = array<i64: 1, 16>}]} {
    %c0 = arith.constant 0 : index
    %0 = memref.load %arg1[%c0] : memref<1xi32, #tpu.memory_space<smem>>
    %c0_i32 = arith.constant 0 : i32
    %1 = arith.cmpi sgt, %0, %c0_i32 : i32
    %2 = arith.extui %1 : i1 to i32
    %c0_i32_0 = arith.constant 0 : i32
    %3 = arith.cmpi ne, %2, %c0_i32_0 : i32
    scf.if %3 {
      %c0_4 = arith.constant 0 : index
      %c0_5 = arith.constant 0 : index
      %8 = vector.load %arg2[%c0_4, %c0_5] : memref<1x16xf32, #tpu.memory_space<vmem>>, vector<1x16xf32>
      %cst = arith.constant 5.000000e-01 : f32
      %9 = vector.broadcast %cst : f32 to vector<1x16xf32>
      %10 = arith.mulf %9, %8 : vector<1x16xf32>
      %11 = math.tanh %10 : vector<1x16xf32>
      %cst_6 = arith.constant 5.000000e-01 : f32
      %12 = vector.broadcast %cst_6 : f32 to vector<1x16xf32>
      %13 = arith.mulf %12, %11 : vector<1x16xf32>
      %cst_7 = arith.constant 5.000000e-01 : f32
      %14 = vector.broadcast %cst_7 : f32 to vector<1x16xf32>
      %15 = arith.addf %13, %14 : vector<1x16xf32>
      %cst_8 = arith.constant 1.200000e+00 : f32
      %16 = vector.broadcast %cst_8 : f32 to vector<1x16xf32>
      %17 = arith.mulf %16, %15 : vector<1x16xf32>
      %cst_9 = arith.constant 1.000000e-01 : f32
      %18 = vector.broadcast %cst_9 : f32 to vector<1x16xf32>
      %19 = arith.subf %17, %18 : vector<1x16xf32>
      %cst_10 = arith.constant 0.000000e+00 : f32
      %cst_11 = arith.constant 1.000000e+00 : f32
      %20 = vector.broadcast %cst_10 : f32 to vector<1x16xf32>
      %21 = arith.maximumf %20, %19 : vector<1x16xf32>
      %22 = vector.broadcast %cst_11 : f32 to vector<1x16xf32>
      %23 = arith.minimumf %22, %21 : vector<1x16xf32>
      %c0_12 = arith.constant 0 : index
      %c0_13 = arith.constant 0 : index
      %24 = vector.load %arg3[%c0_12, %c0_13] : memref<1x16xf32, #tpu.memory_space<vmem>>, vector<1x16xf32>
      tpu.vector_store %arg3[%c0_12, %c0_13], %23 {strides = array<i32>} : memref<1x16xf32, #tpu.memory_space<vmem>>, vector<1x16xf32>,
    } else {
    }
    %c0_1 = arith.constant 0 : index
    %4 = memref.load %arg1[%c0_1] : memref<1xi32, #tpu.memory_space<smem>>
    %c0_i32_2 = arith.constant 0 : i32
    %5 = arith.cmpi sle, %4, %c0_i32_2 : i32
    %6 = arith.extui %5 : i1 to i32
    %c0_i32_3 = arith.constant 0 : i32
    %7 = arith.cmpi ne, %6, %c0_i32_3 : i32
    scf.if %7 {
      %c0_4 = arith.constant 0 : index
      %c0_5 = arith.constant 0 : index
      %8 = vector.load %arg2[%c0_4, %c0_5] : memref<1x16xf32, #tpu.memory_space<vmem>>, vector<1x16xf32>
      %cst = arith.constant 0.000000e+00 : f32
      %9 = vector.broadcast %cst : f32 to vector<1x16xf32>
      %10 = arith.cmpf ogt, %8, %9 : vector<1x16xf32>
      %11 = arith.extui %10 : vector<1x16xi1> to vector<1x16xi32>
      %12 = arith.sitofp %11 : vector<1x16xi32> to vector<1x16xf32>
      %c0_6 = arith.constant 0 : index
      %c0_7 = arith.constant 0 : index
      %13 = vector.load %arg3[%c0_6, %c0_7] : memref<1x16xf32, #tpu.memory_space<vmem>>, vector<1x16xf32>
      tpu.vector_store %arg3[%c0_6, %c0_7], %12 {strides = array<i32>} : memref<1x16xf32, #tpu.memory_space<vmem>>, vector<1x16xf32>,
    } else {
    }
    return
  }
  func.func @transform_0(%arg0: i32, %arg1: memref<1xi32, #tpu.memory_space<smem>>) -> (i32, i32) {
    %c0_i32 = arith.constant 0 : i32
    %c0_i32_0 = arith.constant 0 : i32
    return %arg0, %c0_i32 : i32, i32
  }
  func.func @transform_1(%arg0: i32, %arg1: memref<1xi32, #tpu.memory_space<smem>>) -> (i32, i32) {
    %c0_i32 = arith.constant 0 : i32
    %c0_i32_0 = arith.constant 0 : i32
    return %arg0, %c0_i32 : i32, i32
  }
}

</mosaic_0001>

<llo_original>
// kernel: tpu_custom_call.1
$region0: #{tpu_custom_call.1}
  #allocation0 [shape = 'u32[]', space=smem, size = 0x4, offset = 0x4, fixed_abs, tag = 'smem constant byte address 0x4 - core index']
  #allocation1 [shape = 'u32[144,128]{1,0:T(1,128)}', space=vmem, size = 0x12000, scoped, tag = 'internal scratch']
  #allocation2 [shape = 's32[1]{0}', space=sflag, size = 0x4, scoped, tag = 'scoped memory for tpu_custom_call.1']
  #allocation3 [shape = 's32[1]{0:T(128)S(6)}', space=smem, size = 0x200, scoped, tag = 'prefetched SMEM operand 0']
  %s0 = inlined_call_operand.<no memory space> [shape: s32[1], index: 0, kind: input, shape index: {}]
  %s1 = inlined_call_operand.vmem [shape: f32[1,16], index: 1, kind: input, shape index: {}]
  %s2 = inlined_call_operand.hbm [shape: f32[1,16], index: 2, kind: output, shape index: {}]
  %s3 = sld [smem:[#allocation0]]
  $region22: #{tpu_custom_call.1} parent=0
    _
  %s5 = ssub.s32 1, %s3
  %s6 = scalar_select 0, %s5, %s3
  %7 = sst [smem:[#allocation3]] %s0
  $region1: #{tpu_custom_call.1} parent=0
    #allocation4 [shape = 'u8[512]{0}', space=vmem, size = 0x400, scoped, tag = 'output window, operand 0, single buffered']
    #allocation5 [shape = 's32[1]{0}', space=sflag, size = 0x4, scoped, tag = 'scoped memory for tpu_custom_call.1']
    %8 = vsyncpa [#allocation5], 0
    // Predicated region
    $region2: #{tpu_custom_call.1} parent=1 // pred_check
      _
    $region3: #{tpu_custom_call.1} parent=1 // pred_check_branch
      %10 = sbr.rel (0) target = $region5
    $region4: #{tpu_custom_call.1} parent=1 // pred_region
      _
    $region5: #{tpu_custom_call.1} parent=1 // pred_fallthru
      _
    %s11 = sld [smem:[#allocation3]]
    %p12 = scmp.gt.s32.totalorder %s11, 0
    // Predicated region
    $region6: #{tpu_custom_call.1} parent=1 // pred_check
      %p13 = pneg %p12
    $region7: #{tpu_custom_call.1} parent=1 // pred_check_branch
      %15 = sbr.rel (%p13) target = $region9
    $region8: #{tpu_custom_call.1} parent=1 // pred_region
      %v16 = vld [vmem:[%s1] sm:$0x1]
      %v17 = vmul.f32 %v16, 0.5
      %v18 = vtanh.pop %v17
      %v19 = vmul.f32 %v18, 0.5
      %v20 = vadd.f32 %v19, 0.5
      %v21 = vmul.f32 %v20, 1.2
      %v22 = vsub.f32 %v21, 0.1
      %v23 = vmax.f32 %v22, 0.0
      %v24 = vmin.f32 %v23, 1.0
      %vm25 = vcmask 122880
      %26 = vst.msk [vmem:[#allocation4] sm:$0x1] %vm25, %v24
    $region9: #{tpu_custom_call.1} parent=1 // pred_fallthru
      _
    %s27 = sld [smem:[#allocation3]]
    %p28 = scmp.le.s32.totalorder %s27, 0
    // Predicated region
    $region10: #{tpu_custom_call.1} parent=1 // pred_check
      %p29 = pneg %p28
    $region11: #{tpu_custom_call.1} parent=1 // pred_check_branch
      %31 = sbr.rel (%p29) target = $region13
    $region12: #{tpu_custom_call.1} parent=1 // pred_region
      %v32 = vld [vmem:[%s1] sm:$0x1]
      %vm33 = vcmp.gt.f32.partialorder %v32, 0.0
      %v34 = vsel %vm33, 1, 0
      %v35 = vcvt.s32.f32 %v34
      %vm36 = vcmask 122880
      %37 = vst.msk [vmem:[#allocation4] sm:$0x1] %vm36, %v35
    $region13: #{tpu_custom_call.1} parent=1 // pred_fallthru
      _
    // Predicated region
    $region14: #{tpu_custom_call.1} parent=1 // pred_check
      _
    $region15: #{tpu_custom_call.1} parent=1 // pred_check_branch
      %39 = sbr.rel (0) target = $region17
    $region16: #{tpu_custom_call.1} parent=1 // pred_region
      %s41 = ssub.s32 16, 16
      %42 = vsyncadd [#allocation5], %s41
      %s44 = sshll.u32 [#allocation4], 4
      %s45 = int_to_ptr.vmem [resolvable:$true] %s44
      %47 = dma.vmem_to_hbm [thread:$0]  %s45, 16, %s2, [#allocation5]
    $region17: #{tpu_custom_call.1} parent=1 // pred_fallthru
      _
    // Predicated region
    $region18: #{tpu_custom_call.1} parent=1 // pred_check
      _
    $region19: #{tpu_custom_call.1} parent=1 // pred_check_branch
      %49 = sbr.rel (0) target = $region21
    $region20: #{tpu_custom_call.1} parent=1 // pred_region
      %50 = dma.done [#allocation5], 16
    $region21: #{tpu_custom_call.1} parent=1 // pred_fallthru
      _
    %51 = vsyncpa [#allocation5], 1

</llo_original>
